<compile_context>
chip_gen: v7x
topology: tpu7x:2x2x1
jax: 0.10.0
libtpu: 0.0.40
codegen_flags: <defaults>
</compile_context>

<pallas_src>
import jax
import jax.numpy as jnp
from jax.experimental import pallas as pl
from jax.experimental.pallas import tpu as pltpu

IN_DIM = 784
HIDDEN = 128
N_CLASS = 10
CLS_PAD = 128          # lane-dense output width (unmasked vst)
TB_MAX = 1024          # batch-tile cap: keeps double-buffered f32 inputs well in VMEM


def _round_up(x, m):
    return ((x + m - 1) // m) * m


def _pick_tb(B):
    """Batch tile: multiple of 8, <= TB_MAX, and >=2 grid steps for larger batches
    so the 'parallel' batch axis can shard across v7x's two TensorCores."""
    b8 = _round_up(B, 8)
    if b8 <= 256:
        return b8                       # tiny problem: single step is fine
    return min(TB_MAX, _round_up((b8 + 1) // 2, 8))


def secureml_kernel(x1_ref, x2_ref, w0_ref, b0_ref, w1_ref, b1_ref,
                    w2_ref, b2_ref, o_ref):
    # Reconstruct the secret-shared input in full f32 precision (shares may be
    # large-magnitude and cancel on reconstruction), then narrow for the MXU.
    x = x1_ref[...] + x2_ref[...]
    xb = x.astype(jnp.bfloat16)

    # fc0 + square (bf16 matmul, f32 accumulation & activation)
    h0 = jnp.dot(xb, w0_ref[...], preferred_element_type=jnp.float32) + b0_ref[...]
    h0 = h0 * h0

    # fc1 + square
    h1 = jnp.dot(h0.astype(jnp.bfloat16), w1_ref[...],
                 preferred_element_type=jnp.float32) + b1_ref[...]
    h1 = h1 * h1

    # fc2 (classes padded to 128 lanes; padded weight columns / biases are zero)
    logits = jnp.dot(h1.astype(jnp.bfloat16), w2_ref[...],
                     preferred_element_type=jnp.float32) + b2_ref[...]

    # log-softmax over the first N_CLASS lanes only (explicit mask, f32).
    lane = jax.lax.broadcasted_iota(jnp.int32, logits.shape, 1)
    valid = lane < N_CLASS
    m = jnp.max(jnp.where(valid, logits, -jnp.inf), axis=-1, keepdims=True)
    z = logits - m
    lse = jnp.log(jnp.sum(jnp.where(valid, jnp.exp(z), 0.0),
                          axis=-1, keepdims=True))
    o_ref[...] = (z - lse).astype(o_ref.dtype)


def prepare_params(params):
    """Cast plaintext f32 params into the kernel layout (bf16 W, f32 b, padded classes)."""
    w0, b0, w1, b1, w2, b2 = params
    w0p = w0.astype(jnp.bfloat16)                                  # (784, 128)
    w1p = w1.astype(jnp.bfloat16)                                  # (128, 128)
    w2p = jnp.zeros((HIDDEN, CLS_PAD), jnp.float32).at[:, :N_CLASS].set(w2)
    w2p = w2p.astype(jnp.bfloat16)                                 # (128, 128)
    b0p = b0.reshape(1, HIDDEN).astype(jnp.float32)
    b1p = b1.reshape(1, HIDDEN).astype(jnp.float32)
    b2p = jnp.zeros((1, CLS_PAD), jnp.float32).at[:, :N_CLASS].set(
        b2.reshape(1, N_CLASS))
    return (w0p, b0p, w1p, b1p, w2p, b2p)


def secureml_fivelayer_forward(x1, x2, kparams):
    w0p, b0p, w1p, b1p, w2p, b2p = kparams
    B = x1.shape[0]
    # Reshape only (free for contiguous inputs); no feature padding, no dtype cast:
    # the shares are read by the kernel exactly as they sit in HBM (f32).
    x1f = x1.reshape(B, IN_DIM).astype(jnp.float32)
    x2f = x2.reshape(B, IN_DIM).astype(jnp.float32)

    TB = _pick_tb(B)
    B_pad = _round_up(B, TB)
    if B_pad != B:
        # Batch-only pad (zero rows). Only triggers for ragged batches; no
        # feature-dim rewrite or dtype-cast pass over the shares.
        x1f = jnp.pad(x1f, ((0, B_pad - B), (0, 0)))
        x2f = jnp.pad(x2f, ((0, B_pad - B), (0, 0)))

    grid = (B_pad // TB,)
    batch_spec = pl.BlockSpec((TB, IN_DIM), lambda i: (i, 0))
    const = lambda shape: pl.BlockSpec(shape, lambda i: (0, 0))

    flops = 2 * B_pad * (IN_DIM * HIDDEN + HIDDEN * HIDDEN + HIDDEN * CLS_PAD)
    weight_bytes = ((IN_DIM * HIDDEN + HIDDEN * HIDDEN + HIDDEN * CLS_PAD) * 2
                    + (2 * HIDDEN + CLS_PAD) * 4)
    bytes_accessed = (2 * B_pad * IN_DIM * 4          # f32 share reads
                      + weight_bytes
                      + B_pad * CLS_PAD * 2)          # bf16 output write
    cost = pl.CostEstimate(flops=flops,
                           transcendentals=B_pad * CLS_PAD,
                           bytes_accessed=bytes_accessed)

    y_pad = pl.pallas_call(
        secureml_kernel,
        out_shape=jax.ShapeDtypeStruct((B_pad, CLS_PAD), jnp.bfloat16),
        grid=grid,
        in_specs=[
            batch_spec, batch_spec,
            const((IN_DIM, HIDDEN)), const((1, HIDDEN)),
            const((HIDDEN, HIDDEN)), const((1, HIDDEN)),
            const((HIDDEN, CLS_PAD)), const((1, CLS_PAD)),
        ],
        out_specs=pl.BlockSpec((TB, CLS_PAD), lambda i: (i, 0)),
        compiler_params=pltpu.CompilerParams(
            dimension_semantics=("parallel",),
            # Explicit scoped-VMEM budget: TB=1024 f32 inputs double-buffered is
            # ~13 MiB + temps; 40 MiB clears v5e's 16 MiB / v7x's 32 MiB defaults
            # while leaving headroom under v7x's 64 MiB physical VMEM.
            vmem_limit_bytes=40 * 1024 * 1024),
        cost_estimate=cost,
    )(x1f, x2f, w0p, b0p, w1p, b1p, w2p, b2p)

    y = y_pad[:B, :N_CLASS].astype(jnp.float32)
    # TODO(synk): deterministic 50/50 re-sharing; true Beaver-triple share
    #             randomness has no reproducible equivalent.
    return 0.5 * y, 0.5 * y


def reference_forward(x1, x2, kparams):
    """Pure-JAX reference with the kernel's precision plan (f32 reconstruct,
    bf16 matmul inputs, f32 accumulation, bf16 output)."""
    w0p, b0p, w1p, b1p, w2p, b2p = kparams
    B = x1.shape[0]
    x = (x1.reshape(B, IN_DIM).astype(jnp.float32)
         + x2.reshape(B, IN_DIM).astype(jnp.float32))
    xb = x.astype(jnp.bfloat16)
    h0 = jnp.dot(xb, w0p, preferred_element_type=jnp.float32) + b0p
    h0 = h0 * h0
    h1 = jnp.dot(h0.astype(jnp.bfloat16), w1p,
                 preferred_element_type=jnp.float32) + b1p
    h1 = h1 * h1
    logits = jnp.dot(h1.astype(jnp.bfloat16), w2p,
                     preferred_element_type=jnp.float32) + b2p
    valid = jnp.arange(CLS_PAD) < N_CLASS
    m = jnp.max(jnp.where(valid, logits, -jnp.inf), axis=-1, keepdims=True)
    z = logits - m
    lse = jnp.log(jnp.sum(jnp.where(valid, jnp.exp(z), 0.0),
                          axis=-1, keepdims=True))
    y = (z - lse).astype(jnp.bfloat16).astype(jnp.float32)
    return y[:, :N_CLASS]


def init_params(key):
    k0, k1, k2 = jax.random.split(key, 3)
    # Small deterministic init keeps the squared activations numerically tame.
    w0 = jax.random.normal(k0, (IN_DIM, HIDDEN), jnp.float32) * 0.02
    b0 = jnp.zeros((1, HIDDEN), jnp.float32)
    w1 = jax.random.normal(k1, (HIDDEN, HIDDEN), jnp.float32) * 0.02
    b1 = jnp.zeros((1, HIDDEN), jnp.float32)
    w2 = jax.random.normal(k2, (HIDDEN, N_CLASS), jnp.float32) * 0.02
    b2 = jnp.zeros((1, N_CLASS), jnp.float32)
    return (w0, b0, w1, b1, w2, b2)


if __name__ == "__main__":
    key = jax.random.PRNGKey(0)
    kp, kx = jax.random.split(key)
    params = init_params(kp)
    kparams = prepare_params(params)

    B = 2
    kx1, kx2 = jax.random.split(kx)
    # Two additive shares of an MNIST-shaped input (NCHW).
    x1 = jax.random.normal(kx1, (B, 1, 28, 28), jnp.float32)
    x2 = jax.random.normal(kx2, (B, 1, 28, 28), jnp.float32)

    fwd = jax.jit(secureml_fivelayer_forward)
    out1, out2 = fwd(x1, x2, kparams)
    jax.block_until_ready((out1, out2))
    assert out1.shape == (B, N_CLASS) and out2.shape == (B, N_CLASS)

    # Check vs a reference with the identical precision plan (bf16-output rounding
    # dominates the tolerance).
    ref = reference_forward(x1, x2, kparams)
    assert jnp.allclose(out1 + out2, ref, atol=2e-2, rtol=2e-2), \
        "mismatch vs matched-precision reference"

    # Loose check vs a pure-f32 plaintext forward (bf16 quantization tolerance).
    w0, b0, w1, b1, w2, b2 = params
    x = (x1 + x2).reshape(B, -1)
    h0 = (x @ w0 + b0) ** 2
    h1 = (h0 @ w1 + b1) ** 2
    logits = h1 @ w2 + b2
    ref_f32 = jax.nn.log_softmax(logits, axis=-1)
    assert jnp.allclose(out1 + out2, ref_f32, atol=5e-2, rtol=5e-2), \
        "mismatch vs f32 reference"

    print("KERNEL_OK")
</pallas_src>

<mosaic_0001>
module attributes {stable_mosaic.version = 11 : i64} {
  func.func @secureml_kernel(%arg0: i32, %arg1: memref<8x784xf32, #tpu.memory_space<vmem>>, %arg2: memref<8x784xf32, #tpu.memory_space<vmem>>, %arg3: memref<784x128xbf16, #tpu.memory_space<vmem>>, %arg4: memref<1x128xf32, #tpu.memory_space<vmem>>, %arg5: memref<128x128xbf16, #tpu.memory_space<vmem>>, %arg6: memref<1x128xf32, #tpu.memory_space<vmem>>, %arg7: memref<128x128xbf16, #tpu.memory_space<vmem>>, %arg8: memref<1x128xf32, #tpu.memory_space<vmem>>, %arg9: memref<8x128xbf16, #tpu.memory_space<vmem>>) attributes {dimension_semantics = [#tpu.dimension_semantics<parallel>], iteration_bounds = array<i64: 1>, scalar_prefetch = 0 : i64, scratch_operands = 0 : i64, tpu.core_type = #tpu.core_type<tc>, window_params = [{transform_indices = @transform_0, window_bounds = array<i64: 8, 784>}, {transform_indices = @transform_1, window_bounds = array<i64: 8, 784>}, {pipeline_mode = #tpu.pipeline_mode<synchronous>, transform_indices = @transform_2, window_bounds = array<i64: 784, 128>}, {pipeline_mode = #tpu.pipeline_mode<synchronous>, transform_indices = @transform_3, window_bounds = array<i64: 1, 128>}, {pipeline_mode = #tpu.pipeline_mode<synchronous>, transform_indices = @transform_4, window_bounds = array<i64: 128, 128>}, {pipeline_mode = #tpu.pipeline_mode<synchronous>, transform_indices = @transform_5, window_bounds = array<i64: 1, 128>}, {pipeline_mode = #tpu.pipeline_mode<synchronous>, transform_indices = @transform_6, window_bounds = array<i64: 128, 128>}, {pipeline_mode = #tpu.pipeline_mode<synchronous>, transform_indices = @transform_7, window_bounds = array<i64: 1, 128>}, {transform_indices = @transform_8, window_bounds = array<i64: 8, 128>}]} {
    %c0 = arith.constant 0 : index
    %c0_0 = arith.constant 0 : index
    %0 = vector.load %arg1[%c0, %c0_0] : memref<8x784xf32, #tpu.memory_space<vmem>>, vector<8x784xf32>
    %c0_1 = arith.constant 0 : index
    %c0_2 = arith.constant 0 : index
    %1 = vector.load %arg2[%c0_1, %c0_2] : memref<8x784xf32, #tpu.memory_space<vmem>>, vector<8x784xf32>
    %2 = arith.addf %0, %1 : vector<8x784xf32>
    %3 = arith.truncf %2 : vector<8x784xf32> to vector<8x784xbf16>
    %c0_3 = arith.constant 0 : index
    %c0_4 = arith.constant 0 : index
    %4 = vector.load %arg3[%c0_3, %c0_4] : memref<784x128xbf16, #tpu.memory_space<vmem>>, vector<784x128xbf16>
    %cst = arith.constant dense<0.000000e+00> : vector<8x128xf32>
    %5 = tpu.matmul %3, %4, %cst {dimension_numbers = #tpu.dot_dimension_numbers<[1], [0], [0], [1], [0, 0, 1, 1], [], []>} : vector<8x784xbf16>, vector<784x128xbf16>, vector<8x128xf32> -> vector<8x128xf32>
    %c0_5 = arith.constant 0 : index
    %c0_6 = arith.constant 0 : index
    %6 = vector.load %arg4[%c0_5, %c0_6] : memref<1x128xf32, #tpu.memory_space<vmem>>, vector<1x128xf32>
    %7 = vector.broadcast %6 : vector<1x128xf32> to vector<8x128xf32>
    %8 = arith.addf %5, %7 : vector<8x128xf32>
    %9 = arith.mulf %8, %8 : vector<8x128xf32>
    %10 = arith.truncf %9 : vector<8x128xf32> to vector<8x128xbf16>
    %c0_7 = arith.constant 0 : index
    %c0_8 = arith.constant 0 : index
    %11 = vector.load %arg5[%c0_7, %c0_8] : memref<128x128xbf16, #tpu.memory_space<vmem>>, vector<128x128xbf16>
    %cst_9 = arith.constant dense<0.000000e+00> : vector<8x128xf32>
    %12 = tpu.matmul %10, %11, %cst_9 {dimension_numbers = #tpu.dot_dimension_numbers<[1], [0], [0], [1], [0, 0, 1, 1], [], []>} : vector<8x128xbf16>, vector<128x128xbf16>, vector<8x128xf32> -> vector<8x128xf32>
    %c0_10 = arith.constant 0 : index
    %c0_11 = arith.constant 0 : index
    %13 = vector.load %arg6[%c0_10, %c0_11] : memref<1x128xf32, #tpu.memory_space<vmem>>, vector<1x128xf32>
    %14 = vector.broadcast %13 : vector<1x128xf32> to vector<8x128xf32>
    %15 = arith.addf %12, %14 : vector<8x128xf32>
    %16 = arith.mulf %15, %15 : vector<8x128xf32>
    %17 = arith.truncf %16 : vector<8x128xf32> to vector<8x128xbf16>
    %c0_12 = arith.constant 0 : index
    %c0_13 = arith.constant 0 : index
    %18 = vector.load %arg7[%c0_12, %c0_13] : memref<128x128xbf16, #tpu.memory_space<vmem>>, vector<128x128xbf16>
    %cst_14 = arith.constant dense<0.000000e+00> : vector<8x128xf32>
    %19 = tpu.matmul %17, %18, %cst_14 {dimension_numbers = #tpu.dot_dimension_numbers<[1], [0], [0], [1], [0, 0, 1, 1], [], []>} : vector<8x128xbf16>, vector<128x128xbf16>, vector<8x128xf32> -> vector<8x128xf32>
    %c0_15 = arith.constant 0 : index
    %c0_16 = arith.constant 0 : index
    %20 = vector.load %arg8[%c0_15, %c0_16] : memref<1x128xf32, #tpu.memory_space<vmem>>, vector<1x128xf32>
    %21 = vector.broadcast %20 : vector<1x128xf32> to vector<8x128xf32>
    %22 = arith.addf %19, %21 : vector<8x128xf32>
    %23 = tpu.iota {dimensions = array<i32: 1>} : vector<8x128xi32>
    %c10_i32 = arith.constant 10 : i32
    %24 = vector.broadcast %c10_i32 : i32 to vector<8x128xi32>
    %25 = arith.cmpi slt, %23, %24 : vector<8x128xi32>
    %cst_17 = arith.constant 0xFF800000 : f32
    %26 = vector.broadcast %cst_17 : f32 to vector<8x128xf32>
    %27 = arith.select %25, %22, %26 : vector<8x128xi1>, vector<8x128xf32>
    %cst_18 = arith.constant dense<0xFF800000> : vector<8xf32>
    %28 = vector.multi_reduction <maximumf>, %27, %cst_18 [1] : vector<8x128xf32> to vector<8xf32>
    %29 = vector.shape_cast %28 : vector<8xf32> to vector<8x1xf32>
    %30 = vector.broadcast %29 : vector<8x1xf32> to vector<8x128xf32>
    %31 = arith.subf %22, %30 : vector<8x128xf32>
    %32 = math.exp %31 : vector<8x128xf32>
    %cst_19 = arith.constant 0.000000e+00 : f32
    %33 = vector.broadcast %cst_19 : f32 to vector<8x128xf32>
    %34 = arith.select %25, %32, %33 : vector<8x128xi1>, vector<8x128xf32>
    %cst_20 = arith.constant dense<0.000000e+00> : vector<8xf32>
    %35 = vector.multi_reduction <add>, %34, %cst_20 [1] : vector<8x128xf32> to vector<8xf32>
    %36 = vector.shape_cast %35 : vector<8xf32> to vector<8x1xf32>
    %37 = math.log %36 : vector<8x1xf32>
    %38 = vector.broadcast %37 : vector<8x1xf32> to vector<8x128xf32>
    %39 = arith.subf %31, %38 : vector<8x128xf32>
    %40 = arith.truncf %39 : vector<8x128xf32> to vector<8x128xbf16>
    %c0_21 = arith.constant 0 : index
    %c0_22 = arith.constant 0 : index
    %41 = vector.load %arg9[%c0_21, %c0_22] : memref<8x128xbf16, #tpu.memory_space<vmem>>, vector<8x128xbf16>
    tpu.vector_store %arg9[%c0_21, %c0_22], %40 {strides = array<i32>} : memref<8x128xbf16, #tpu.memory_space<vmem>>, vector<8x128xbf16>,
    return
  }
  func.func @transform_0(%arg0: i32) -> (i32, i32) {
    %c0_i32 = arith.constant 0 : i32
    %c0_i32_0 = arith.constant 0 : i32
    return %arg0, %c0_i32 : i32, i32
  }
  func.func @transform_1(%arg0: i32) -> (i32, i32) {
    %c0_i32 = arith.constant 0 : i32
    %c0_i32_0 = arith.constant 0 : i32
    return %arg0, %c0_i32 : i32, i32
  }
  func.func @transform_2(%arg0: i32) -> (i32, i32) {
    %c0_i32 = arith.constant 0 : i32
    %c0_i32_0 = arith.constant 0 : i32
    %c0_i32_1 = arith.constant 0 : i32
    return %c0_i32, %c0_i32_0 : i32, i32
  }
  func.func @transform_3(%arg0: i32) -> (i32, i32) {
    %c0_i32 = arith.constant 0 : i32
    %c0_i32_0 = arith.constant 0 : i32
    %c0_i32_1 = arith.constant 0 : i32
    return %c0_i32, %c0_i32_0 : i32, i32
  }
  func.func @transform_4(%arg0: i32) -> (i32, i32) {
    %c0_i32 = arith.constant 0 : i32
    %c0_i32_0 = arith.constant 0 : i32
    %c0_i32_1 = arith.constant 0 : i32
    return %c0_i32, %c0_i32_0 : i32, i32
  }
  func.func @transform_5(%arg0: i32) -> (i32, i32) {
    %c0_i32 = arith.constant 0 : i32
    %c0_i32_0 = arith.constant 0 : i32
    %c0_i32_1 = arith.constant 0 : i32
    return %c0_i32, %c0_i32_0 : i32, i32
  }
  func.func @transform_6(%arg0: i32) -> (i32, i32) {
    %c0_i32 = arith.constant 0 : i32
    %c0_i32_0 = arith.constant 0 : i32
    %c0_i32_1 = arith.constant 0 : i32
    return %c0_i32, %c0_i32_0 : i32, i32
  }
  func.func @transform_7(%arg0: i32) -> (i32, i32) {
    %c0_i32 = arith.constant 0 : i32
    %c0_i32_0 = arith.constant 0 : i32
    %c0_i32_1 = arith.constant 0 : i32
    return %c0_i32, %c0_i32_0 : i32, i32
  }
  func.func @transform_8(%arg0: i32) -> (i32, i32) {
    %c0_i32 = arith.constant 0 : i32
    %c0_i32_0 = arith.constant 0 : i32
    return %arg0, %c0_i32 : i32, i32
  }
}

</mosaic_0001>

<llo_original>
// kernel: secureml_fivelayer_forward.1
$region0: #{secureml_fivelayer_forward.1}
  #allocation0 [shape = 'u32[]', space=smem, size = 0x4, offset = 0x4, fixed_abs, tag = 'smem constant byte address 0x4 - core index']
  #allocation1 [shape = 'u32[144,128]{1,0:T(1,128)}', space=vmem, size = 0x12000, scoped, tag = 'internal scratch']
  %s0 = inlined_call_operand.vmem [shape: f32[8,784], index: 0, kind: input, shape index: {}]
  %s1 = inlined_call_operand.vmem [shape: f32[8,784], index: 1, kind: input, shape index: {}]
  %s2 = inlined_call_operand.vmem [shape: bf16[784,128], index: 2, kind: input, shape index: {}]
  %s3 = inlined_call_operand.vmem [shape: f32[1,128], index: 3, kind: input, shape index: {}]
  %s4 = inlined_call_operand.vmem [shape: bf16[128,128], index: 4, kind: input, shape index: {}]
  %s5 = inlined_call_operand.vmem [shape: f32[1,128], index: 5, kind: input, shape index: {}]
  %s6 = inlined_call_operand.vmem [shape: bf16[128,128], index: 6, kind: input, shape index: {}]
  %s7 = inlined_call_operand.vmem [shape: f32[1,128], index: 7, kind: input, shape index: {}]
  %s8 = inlined_call_operand.vmem [shape: bf16[8,128], index: 8, kind: output, shape index: {}]
  %s9 = sld [smem:[#allocation0]]
  $region42: #{secureml_fivelayer_forward.1} parent=0
    _
  %s11 = ssub.s32 1, %s9
  %s12 = scalar_select 0, %s11, %s9
  // Predicated region
  $region2: #{secureml_fivelayer_forward.1} parent=0 // pred_check
    _
  $region3: #{secureml_fivelayer_forward.1} parent=0 // pred_check_branch
    %14 = sbr.rel (0) target = $region5
  $region4: #{secureml_fivelayer_forward.1} parent=0 // pred_region
    _
  $region5: #{secureml_fivelayer_forward.1} parent=0 // pred_fallthru
    _
  // Predicated region
  $region6: #{secureml_fivelayer_forward.1} parent=0 // pred_check
    _
  $region7: #{secureml_fivelayer_forward.1} parent=0 // pred_check_branch
    %16 = sbr.rel (0) target = $region9
  $region8: #{secureml_fivelayer_forward.1} parent=0 // pred_region
    _
  $region9: #{secureml_fivelayer_forward.1} parent=0 // pred_fallthru
    _
  // Predicated region
  $region10: #{secureml_fivelayer_forward.1} parent=0 // pred_check
    _
  $region11: #{secureml_fivelayer_forward.1} parent=0 // pred_check_branch
    %18 = sbr.rel (0) target = $region13
  $region12: #{secureml_fivelayer_forward.1} parent=0 // pred_region
    _
  $region13: #{secureml_fivelayer_forward.1} parent=0 // pred_fallthru
    _
  // Predicated region
  $region14: #{secureml_fivelayer_forward.1} parent=0 // pred_check
    _
  $region15: #{secureml_fivelayer_forward.1} parent=0 // pred_check_branch
    %20 = sbr.rel (0) target = $region17
  $region16: #{secureml_fivelayer_forward.1} parent=0 // pred_region
    _
  $region17: #{secureml_fivelayer_forward.1} parent=0 // pred_fallthru
    _
  // Predicated region
  $region18: #{secureml_fivelayer_forward.1} parent=0 // pred_check
    _
  $region19: #{secureml_fivelayer_forward.1} parent=0 // pred_check_branch
    %22 = sbr.rel (0) target = $region21
  $region20: #{secureml_fivelayer_forward.1} parent=0 // pred_region
    _
  $region21: #{secureml_fivelayer_forward.1} parent=0 // pred_fallthru
    _
  // Predicated region
  $region22: #{secureml_fivelayer_forward.1} parent=0 // pred_check
    _
  $region23: #{secureml_fivelayer_forward.1} parent=0 // pred_check_branch
    %24 = sbr.rel (0) target = $region25
  $region24: #{secureml_fivelayer_forward.1} parent=0 // pred_region
    _
  $region25: #{secureml_fivelayer_forward.1} parent=0 // pred_fallthru
    _
  // Predicated region
  $region26: #{secureml_fivelayer_forward.1} parent=0 // pred_check
    _
  $region27: #{secureml_fivelayer_forward.1} parent=0 // pred_check_branch
    %26 = sbr.rel (0) target = $region29
  $region28: #{secureml_fivelayer_forward.1} parent=0 // pred_region
    _
  $region29: #{secureml_fivelayer_forward.1} parent=0 // pred_fallthru
    _
  // Predicated region
  $region30: #{secureml_fivelayer_forward.1} parent=0 // pred_check
    _
  $region31: #{secureml_fivelayer_forward.1} parent=0 // pred_check_branch
    %28 = sbr.rel (0) target = $region33
  $region32: #{secureml_fivelayer_forward.1} parent=0 // pred_region
    _
  $region33: #{secureml_fivelayer_forward.1} parent=0 // pred_fallthru
    _
  %v30 = vld [vmem:[%s0] sm:$0xff]
  %v31 = vld [vmem:[%s0 + $0x8] sm:$0xff]
  %v32 = vld [vmem:[%s0 + $0x10] sm:$0xff]
  %v33 = vld [vmem:[%s0 + $0x18] sm:$0xff]
  %v34 = vld [vmem:[%s0 + $0x20] sm:$0xff]
  %v35 = vld [vmem:[%s0 + $0x28] sm:$0xff]
  %v36 = vld [vmem:[%s0 + $0x30] sm:$0xff]
  %v37 = vld [vmem:[%s1] sm:$0xff]
  %v38 = vld [vmem:[%s1 + $0x8] sm:$0xff]
  %v39 = vld [vmem:[%s1 + $0x10] sm:$0xff]
  %v40 = vld [vmem:[%s1 + $0x18] sm:$0xff]
  %v41 = vld [vmem:[%s1 + $0x20] sm:$0xff]
  %v42 = vld [vmem:[%s1 + $0x28] sm:$0xff]
  %v43 = vld [vmem:[%s1 + $0x30] sm:$0xff]
  %v44 = vadd.f32 %v30, %v37
  %v45 = vadd.f32 %v31, %v38
  %v46 = vadd.f32 %v32, %v39
  %v47 = vadd.f32 %v33, %v40
  %v48 = vadd.f32 %v34, %v41
  %v49 = vadd.f32 %v35, %v42
  %v50 = vadd.f32 %v36, %v43
  %v51 = vpack.c.bf16 %v44, %v44
  %v52 = vpack.c.bf16 %v45, %v45
  %v53 = vpack.c.bf16 %v46, %v46
  %v54 = vpack.c.bf16 %v47, %v47
  %v55 = vpack.c.bf16 %v48, %v48
  %v56 = vpack.c.bf16 %v49, %v49
  %v57 = vpack.c.bf16 %v50, %v50
  %v58 = vld [vmem:[%s2] sm:$0xf]
  %v59 = vld [vmem:[%s2 + $0x4] sm:$0xf]
  %v60 = vld [vmem:[%s2 + $0x8] sm:$0xf]
  %v61 = vld [vmem:[%s2 + $0xc] sm:$0xf]
  %v62 = vld [vmem:[%s2 + $0x10] sm:$0xf]
  %v63 = vld [vmem:[%s2 + $0x14] sm:$0xf]
  %v64 = vld [vmem:[%s2 + $0x18] sm:$0xf]
  %v65 = vld [vmem:[%s2 + $0x1c] sm:$0xf]
  %v66 = vld [vmem:[%s2 + $0x20] sm:$0xf]
  %v67 = vld [vmem:[%s2 + $0x24] sm:$0xf]
  %v68 = vld [vmem:[%s2 + $0x28] sm:$0xf]
  %v69 = vld [vmem:[%s2 + $0x2c] sm:$0xf]
  %v70 = vld [vmem:[%s2 + $0x30] sm:$0xf]
  %v71 = vld [vmem:[%s2 + $0x34] sm:$0xf]
  %v72 = vld [vmem:[%s2 + $0x38] sm:$0xf]
  %v73 = vld [vmem:[%s2 + $0x3c] sm:$0xf]
  %v74 = vld [vmem:[%s2 + $0x40] sm:$0xf]
  %v75 = vld [vmem:[%s2 + $0x44] sm:$0xf]
  %v76 = vld [vmem:[%s2 + $0x48] sm:$0xf]
  %v77 = vld [vmem:[%s2 + $0x4c] sm:$0xf]
  %v78 = vld [vmem:[%s2 + $0x50] sm:$0xf]
  %v79 = vld [vmem:[%s2 + $0x54] sm:$0xf]
  %v80 = vld [vmem:[%s2 + $0x58] sm:$0xf]
  %v81 = vld [vmem:[%s2 + $0x5c] sm:$0xf]
  %v82 = vld [vmem:[%s2 + $0x60] sm:$0xf]
  %v83 = vld [vmem:[%s2 + $0x64] sm:$0xf]
  %v84 = vld [vmem:[%s2 + $0x68] sm:$0xf]
  %v85 = vld [vmem:[%s2 + $0x6c] sm:$0xf]
  %v86 = vld [vmem:[%s2 + $0x70] sm:$0xf]
  %v87 = vld [vmem:[%s2 + $0x74] sm:$0xf]
  %v88 = vld [vmem:[%s2 + $0x78] sm:$0xf]
  %v89 = vld [vmem:[%s2 + $0x7c] sm:$0xf]
  %v90 = vld [vmem:[%s2 + $0x80] sm:$0xf]
  %v91 = vld [vmem:[%s2 + $0x84] sm:$0xf]
  %v92 = vld [vmem:[%s2 + $0x88] sm:$0xf]
  %v93 = vld [vmem:[%s2 + $0x8c] sm:$0xf]
  %v94 = vld [vmem:[%s2 + $0x90] sm:$0xf]
  %v95 = vld [vmem:[%s2 + $0x94] sm:$0xf]
  %v96 = vld [vmem:[%s2 + $0x98] sm:$0xf]
  %v97 = vld [vmem:[%s2 + $0x9c] sm:$0xf]
  %v98 = vld [vmem:[%s2 + $0xa0] sm:$0xf]
  %v99 = vld [vmem:[%s2 + $0xa4] sm:$0xf]
  %v100 = vld [vmem:[%s2 + $0xa8] sm:$0xf]
  %v101 = vld [vmem:[%s2 + $0xac] sm:$0xf]
  %v102 = vld [vmem:[%s2 + $0xb0] sm:$0xf]
  %v103 = vld [vmem:[%s2 + $0xb4] sm:$0xf]
  %v104 = vld [vmem:[%s2 + $0xb8] sm:$0xf]
  %v105 = vld [vmem:[%s2 + $0xbc] sm:$0xf]
  %v106 = vld [vmem:[%s2 + $0xc0] sm:$0xf]
  %v107 = vld [vmem:[%s2 + $0xc4] sm:$0xf]
  %v108 = vld [vmem:[%s2 + $0xc8] sm:$0xf]
  %v109 = vld [vmem:[%s2 + $0xcc] sm:$0xf]
  %v110 = vld [vmem:[%s2 + $0xd0] sm:$0xf]
  %v111 = vld [vmem:[%s2 + $0xd4] sm:$0xf]
  %v112 = vld [vmem:[%s2 + $0xd8] sm:$0xf]
  %v113 = vld [vmem:[%s2 + $0xdc] sm:$0xf]
  %v114 = vld [vmem:[%s2 + $0xe0] sm:$0xf]
  %v115 = vld [vmem:[%s2 + $0xe4] sm:$0xf]
  %v116 = vld [vmem:[%s2 + $0xe8] sm:$0xf]
  %v117 = vld [vmem:[%s2 + $0xec] sm:$0xf]
  %v118 = vld [vmem:[%s2 + $0xf0] sm:$0xf]
  %v119 = vld [vmem:[%s2 + $0xf4] sm:$0xf]
  %v120 = vld [vmem:[%s2 + $0xf8] sm:$0xf]
  %v121 = vld [vmem:[%s2 + $0xfc] sm:$0xf]
  %v122 = vld [vmem:[%s2 + $0x100] sm:$0xf]
  %v123 = vld [vmem:[%s2 + $0x104] sm:$0xf]
  %v124 = vld [vmem:[%s2 + $0x108] sm:$0xf]
  %v125 = vld [vmem:[%s2 + $0x10c] sm:$0xf]
  %v126 = vld [vmem:[%s2 + $0x110] sm:$0xf]
  %v127 = vld [vmem:[%s2 + $0x114] sm:$0xf]
  %v128 = vld [vmem:[%s2 + $0x118] sm:$0xf]
  %v129 = vld [vmem:[%s2 + $0x11c] sm:$0xf]
  %v130 = vld [vmem:[%s2 + $0x120] sm:$0xf]
  %v131 = vld [vmem:[%s2 + $0x124] sm:$0xf]
  %v132 = vld [vmem:[%s2 + $0x128] sm:$0xf]
  %v133 = vld [vmem:[%s2 + $0x12c] sm:$0xf]
  %v134 = vld [vmem:[%s2 + $0x130] sm:$0xf]
  %v135 = vld [vmem:[%s2 + $0x134] sm:$0xf]
  %v136 = vld [vmem:[%s2 + $0x138] sm:$0xf]
  %v137 = vld [vmem:[%s2 + $0x13c] sm:$0xf]
  %v138 = vld [vmem:[%s2 + $0x140] sm:$0xf]
  %v139 = vld [vmem:[%s2 + $0x144] sm:$0xf]
  %v140 = vld [vmem:[%s2 + $0x148] sm:$0xf]
  %v141 = vld [vmem:[%s2 + $0x14c] sm:$0xf]
  %v142 = vld [vmem:[%s2 + $0x150] sm:$0xf]
  %v143 = vld [vmem:[%s2 + $0x154] sm:$0xf]
  %v144 = vld [vmem:[%s2 + $0x158] sm:$0xf]
  %v145 = vld [vmem:[%s2 + $0x15c] sm:$0xf]
  %v146 = vld [vmem:[%s2 + $0x160] sm:$0xf]
  %v147 = vld [vmem:[%s2 + $0x164] sm:$0xf]
  %v148 = vld [vmem:[%s2 + $0x168] sm:$0xf]
  %v149 = vld [vmem:[%s2 + $0x16c] sm:$0xf]
  %v150 = vld [vmem:[%s2 + $0x170] sm:$0xf]
  %v151 = vld [vmem:[%s2 + $0x174] sm:$0xf]
  %v152 = vld [vmem:[%s2 + $0x178] sm:$0xf]
  %v153 = vld [vmem:[%s2 + $0x17c] sm:$0xf]
  %v154 = vld [vmem:[%s2 + $0x180] sm:$0xf]
  %v155 = vld [vmem:[%s2 + $0x184] sm:$0xf]
  %v156 = vld [vmem:[%s3] sm:$0x1]
  %v158 = vlaneseq
  %v159 = vshrl.u32 %v158, 7
  %v160 = vsub.s32 0, %v159
  %v161 = vrot.slane %v156, %v160
  %v261 = vunpack.c.l.b16 %v58
  %v262 = vunpack.c.l.b16 %v59
  %v263 = vunpack.c.l.b16 %v60
  %v264 = vunpack.c.l.b16 %v61
  %v265 = vunpack.c.l.b16 %v62
  %v266 = vunpack.c.l.b16 %v63
  %v267 = vunpack.c.l.b16 %v64
  %v268 = vunpack.c.l.b16 %v65
  %v269 = vunpack.c.l.b16 %v66
  %v270 = vunpack.c.l.b16 %v67
  %v271 = vunpack.c.l.b16 %v68
  %v272 = vunpack.c.l.b16 %v69
  %v273 = vunpack.c.l.b16 %v70
  %v274 = vunpack.c.l.b16 %v71
  %v275 = vunpack.c.l.b16 %v72
  %v276 = vunpack.c.l.b16 %v73
  %v277 = vunpack.c.l.b16 %v74
  %v278 = vunpack.c.l.b16 %v75
  %v279 = vunpack.c.l.b16 %v76
  %v280 = vunpack.c.l.b16 %v77
  %v281 = vunpack.c.l.b16 %v78
  %v282 = vunpack.c.l.b16 %v79
  %v283 = vunpack.c.l.b16 %v80
  %v284 = vunpack.c.l.b16 %v81
  %v285 = vunpack.c.l.b16 %v82
  %v286 = vunpack.c.l.b16 %v83
  %v287 = vunpack.c.l.b16 %v84
  %v288 = vunpack.c.l.b16 %v85
  %v289 = vunpack.c.l.b16 %v86
  %v290 = vunpack.c.l.b16 %v87
  %v291 = vunpack.c.l.b16 %v88
  %v292 = vunpack.c.l.b16 %v89
  %v293 = vunpack.c.l.b16 %v90
  %v294 = vunpack.c.l.b16 %v91
  %v295 = vunpack.c.l.b16 %v92
  %v296 = vunpack.c.l.b16 %v93
  %v297 = vunpack.c.l.b16 %v94
  %v298 = vunpack.c.l.b16 %v95
  %v299 = vunpack.c.l.b16 %v96
  %v300 = vunpack.c.l.b16 %v97
  %v301 = vunpack.c.l.b16 %v98
  %v302 = vunpack.c.l.b16 %v99
  %v303 = vunpack.c.l.b16 %v100
  %v304 = vunpack.c.l.b16 %v101
  %v305 = vunpack.c.l.b16 %v102
  %v306 = vunpack.c.l.b16 %v103
  %v307 = vunpack.c.l.b16 %v104
  %v308 = vunpack.c.l.b16 %v105
  %v309 = vunpack.c.l.b16 %v106
  %v310 = vunpack.c.l.b16 %v107
  %v311 = vunpack.c.l.b16 %v108
  %v312 = vunpack.c.l.b16 %v109
  %v313 = vunpack.c.l.b16 %v110
  %v314 = vunpack.c.l.b16 %v111
  %v315 = vunpack.c.l.b16 %v112
  %v316 = vunpack.c.l.b16 %v113
  %v317 = vunpack.c.l.b16 %v114
  %v318 = vunpack.c.l.b16 %v115
  %v319 = vunpack.c.l.b16 %v116
  %v320 = vunpack.c.l.b16 %v117
  %v321 = vunpack.c.l.b16 %v118
  %v322 = vunpack.c.l.b16 %v119
  %v323 = vunpack.c.l.b16 %v120
  %v324 = vunpack.c.l.b16 %v121
  %v325 = vunpack.c.l.b16 %v122
  %v326 = vunpack.c.l.b16 %v123
  %v327 = vunpack.c.l.b16 %v124
  %v328 = vunpack.c.l.b16 %v125
  %v329 = vunpack.c.l.b16 %v126
  %v330 = vunpack.c.l.b16 %v127
  %v331 = vunpack.c.l.b16 %v128
  %v332 = vunpack.c.l.b16 %v129
  %v333 = vunpack.c.l.b16 %v130
  %v334 = vunpack.c.l.b16 %v131
  %v335 = vunpack.c.l.b16 %v132
  %v336 = vunpack.c.l.b16 %v133
  %v337 = vunpack.c.l.b16 %v134
  %v338 = vunpack.c.l.b16 %v135
  %v339 = vunpack.c.l.b16 %v136
  %v340 = vunpack.c.l.b16 %v137
  %v341 = vunpack.c.l.b16 %v138
  %v342 = vunpack.c.l.b16 %v139
  %v343 = vunpack.c.l.b16 %v140
  %v344 = vunpack.c.l.b16 %v141
  %v345 = vunpack.c.l.b16 %v142
  %v346 = vunpack.c.l.b16 %v143
  %v347 = vunpack.c.l.b16 %v144
  %v348 = vunpack.c.l.b16 %v145
  %v349 = vunpack.c.l.b16 %v146
  %v350 = vunpack.c.l.b16 %v147
  %v351 = vunpack.c.l.b16 %v148
  %v352 = vunpack.c.l.b16 %v149
  %v353 = vunpack.c.l.b16 %v150
  %v354 = vunpack.c.l.b16 %v151
  %v355 = vunpack.c.l.b16 %v152
  %v356 = vunpack.c.l.b16 %v153
  %v357 = vunpack.c.l.b16 %v154
  %v358 = vunpack.c.l.b16 %v155
  %v359 = vpack.c.b16 %v262, %v261
  %v360 = vpack.c.b16 %v264, %v263
  %v361 = vpack.c.b16 %v266, %v265
  %v362 = vpack.c.b16 %v268, %v267
  %v363 = vpack.c.b16 %v270, %v269
  %v364 = vpack.c.b16 %v272, %v271
  %v365 = vpack.c.b16 %v274, %v273
  %v366 = vpack.c.b16 %v276, %v275
  %v367 = vpack.c.b16 %v278, %v277
  %v368 = vpack.c.b16 %v280, %v279
  %v369 = vpack.c.b16 %v282, %v281
  %v370 = vpack.c.b16 %v284, %v283
  %v371 = vpack.c.b16 %v286, %v285
  %v372 = vpack.c.b16 %v288, %v287
  %v373 = vpack.c.b16 %v290, %v289
  %v374 = vpack.c.b16 %v292, %v291
  %v375 = vpack.c.b16 %v294, %v293
  %v376 = vpack.c.b16 %v296, %v295
  %v377 = vpack.c.b16 %v298, %v297
  %v378 = vpack.c.b16 %v300, %v299
  %v379 = vpack.c.b16 %v302, %v301
  %v380 = vpack.c.b16 %v304, %v303
  %v381 = vpack.c.b16 %v306, %v305
  %v382 = vpack.c.b16 %v308, %v307
  %v383 = vpack.c.b16 %v310, %v309
  %v384 = vpack.c.b16 %v312, %v311
  %v385 = vpack.c.b16 %v314, %v313
  %v386 = vpack.c.b16 %v316, %v315
  %v387 = vpack.c.b16 %v318, %v317
  %v388 = vpack.c.b16 %v320, %v319
  %v389 = vpack.c.b16 %v322, %v321
  %v390 = vpack.c.b16 %v324, %v323
  %v391 = vpack.c.b16 %v326, %v325
  %v392 = vpack.c.b16 %v328, %v327
  %v393 = vpack.c.b16 %v330, %v329
  %v394 = vpack.c.b16 %v332, %v331
  %v395 = vpack.c.b16 %v334, %v333
  %v396 = vpack.c.b16 %v336, %v335
  %v397 = vpack.c.b16 %v338, %v337
  %v398 = vpack.c.b16 %v340, %v339
  %v399 = vpack.c.b16 %v342, %v341
  %v400 = vpack.c.b16 %v344, %v343
  %v401 = vpack.c.b16 %v346, %v345
  %v402 = vpack.c.b16 %v348, %v347
  %v403 = vpack.c.b16 %v350, %v349
  %v404 = vpack.c.b16 %v352, %v351
  %v405 = vpack.c.b16 %v354, %v353
  %v406 = vpack.c.b16 %v356, %v355
  %v407 = vpack.c.b16 %v358, %v357
  %vm457 = vcmask 130048
  %v459 = vsel %vm457, %v57, 0
  %461 = vmatprep.subr.bf16.mxu0 0
  %462 = vmatpush1.bf16.msra.mxu0 %v359
  %463 = vmatprep.subr.bf16.mxu0 0
  %464 = vmatpush1.bf16.msra.mxu0 %v360
  %465 = vmatprep.subr.bf16.mxu0 0
  %466 = vmatpush1.bf16.msra.mxu0 %v361
  %467 = vmatprep.subr.bf16.mxu0 0
  %468 = vmatpush1.bf16.msra.mxu0 %v362
  %469 = vmatprep.subr.bf16.mxu0 0
  %470 = vmatpush1.bf16.msra.mxu0 %v363
  %471 = vmatprep.subr.bf16.mxu0 0
  %472 = vmatpush1.bf16.msra.mxu0 %v364
  %473 = vmatprep.subr.bf16.mxu0 0
  %474 = vmatpush1.bf16.msra.mxu0 %v365
  %475 = vmatprep.subr.bf16.mxu0 0
  %476 = vmatpush1.bf16.msra.mxu0 %v366
  %477 = vmatprep.subr.bf16.mxu0 0
  %478 = vmatpush1.bf16.msra.mxu0 %v367
  %479 = vmatprep.subr.bf16.mxu0 0
  %480 = vmatpush1.bf16.msra.mxu0 %v368
  %481 = vmatprep.subr.bf16.mxu0 0
  %482 = vmatpush1.bf16.msra.mxu0 %v369
  %483 = vmatprep.subr.bf16.mxu0 0
  %484 = vmatpush1.bf16.msra.mxu0 %v370
  %485 = vmatprep.subr.bf16.mxu0 0
  %486 = vmatpush1.bf16.msra.mxu0 %v371
  %487 = vmatprep.subr.bf16.mxu0 0
  %488 = vmatpush1.bf16.msra.mxu0 %v372
  %489 = vmatprep.subr.bf16.mxu0 0
  %490 = vmatpush1.bf16.msra.mxu0 %v373
  %491 = vmatprep.subr.bf16.mxu0 0
  %492 = vmatpush1.bf16.msra.mxu0 %v374
  %493 = vmatprep.mubr.bf16.mxu0 %v52
  %494 = vmatmul.mubr.bf16.gmra.mrb[0].mxu0 %v51
  %v495 = vpop.f32.mrb[0].mxu0
  %v496 = vadd.f32 %v161, %v495
  %v497 = vpop.f32.mrb[0].mxu0
  %v498 = vpop.f32.mrb[0].mxu0
  %v499 = vpop.f32.mrb[0].mxu0
  %500 = vdwg.mxu0
  %501 = vmatprep.subr.bf16.mxu0 0
  %502 = vmatpush1.bf16.msra.mxu0 %v375
  %503 = vmatprep.subr.bf16.mxu0 0
  %504 = vmatpush1.bf16.msra.mxu0 %v376
  %505 = vmatprep.subr.bf16.mxu0 0
  %506 = vmatpush1.bf16.msra.mxu0 %v377
  %507 = vmatprep.subr.bf16.mxu0 0
  %508 = vmatpush1.bf16.msra.mxu0 %v378
  %509 = vmatprep.subr.bf16.mxu0 0
  %510 = vmatpush1.bf16.msra.mxu0 %v379
  %511 = vmatprep.subr.bf16.mxu0 0
  %512 = vmatpush1.bf16.msra.mxu0 %v380
  %513 = vmatprep.subr.bf16.mxu0 0
  %514 = vmatpush1.bf16.msra.mxu0 %v381
  %515 = vmatprep.subr.bf16.mxu0 0
  %516 = vmatpush1.bf16.msra.mxu0 %v382
  %517 = vmatprep.subr.bf16.mxu0 0
  %518 = vmatpush1.bf16.msra.mxu0 %v383
  %519 = vmatprep.subr.bf16.mxu0 0
  %520 = vmatpush1.bf16.msra.mxu0 %v384
  %521 = vmatprep.subr.bf16.mxu0 0
  %522 = vmatpush1.bf16.msra.mxu0 %v385
  %523 = vmatprep.subr.bf16.mxu0 0
  %524 = vmatpush1.bf16.msra.mxu0 %v386
  %525 = vmatprep.subr.bf16.mxu0 0
  %526 = vmatpush1.bf16.msra.mxu0 %v387
  %527 = vmatprep.subr.bf16.mxu0 0
  %528 = vmatpush1.bf16.msra.mxu0 %v388
  %529 = vmatprep.subr.bf16.mxu0 0
  %530 = vmatpush1.bf16.msra.mxu0 %v389
  %531 = vmatprep.subr.bf16.mxu0 0
  %532 = vmatpush1.bf16.msra.mxu0 %v390
  %533 = vmatprep.mubr.bf16.mxu0 %v54
  %534 = vmatmul.mubr.bf16.gmra.mrb[0].mxu0 %v53
  %v535 = vpop.f32.mrb[0].mxu0
  %v536 = vadd.f32 %v496, %v535
  %v537 = vpop.f32.mrb[0].mxu0
  %v538 = vpop.f32.mrb[0].mxu0
  %v539 = vpop.f32.mrb[0].mxu0
  %540 = vdwg.mxu0
  %541 = vmatprep.subr.bf16.mxu0 0
  %542 = vmatpush1.bf16.msra.mxu0 %v391
  %543 = vmatprep.subr.bf16.mxu0 0
  %544 = vmatpush1.bf16.msra.mxu0 %v392
  %545 = vmatprep.subr.bf16.mxu0 0
  %546 = vmatpush1.bf16.msra.mxu0 %v393
  %547 = vmatprep.subr.bf16.mxu0 0
  %548 = vmatpush1.bf16.msra.mxu0 %v394
  %549 = vmatprep.subr.bf16.mxu0 0
  %550 = vmatpush1.bf16.msra.mxu0 %v395
  %551 = vmatprep.subr.bf16.mxu0 0
  %552 = vmatpush1.bf16.msra.mxu0 %v396
  %553 = vmatprep.subr.bf16.mxu0 0
  %554 = vmatpush1.bf16.msra.mxu0 %v397
  %555 = vmatprep.subr.bf16.mxu0 0
  %556 = vmatpush1.bf16.msra.mxu0 %v398
  %557 = vmatprep.subr.bf16.mxu0 0
  %558 = vmatpush1.bf16.msra.mxu0 %v399
  %559 = vmatprep.subr.bf16.mxu0 0
  %560 = vmatpush1.bf16.msra.mxu0 %v400
  %561 = vmatprep.subr.bf16.mxu0 0
  %562 = vmatpush1.bf16.msra.mxu0 %v401
  %563 = vmatprep.subr.bf16.mxu0 0
  %564 = vmatpush1.bf16.msra.mxu0 %v402
  %565 = vmatprep.subr.bf16.mxu0 0
  %566 = vmatpush1.bf16.msra.mxu0 %v403
  %567 = vmatprep.subr.bf16.mxu0 0
  %568 = vmatpush1.bf16.msra.mxu0 %v404
  %569 = vmatprep.subr.bf16.mxu0 0
  %570 = vmatpush1.bf16.msra.mxu0 %v405
  %571 = vmatprep.subr.bf16.mxu0 0
  %572 = vmatpush1.bf16.msra.mxu0 %v406
  %573 = vmatprep.mubr.bf16.mxu0 %v56
  %574 = vmatmul.mubr.bf16.gmra.mrb[0].mxu0 %v55
  %v575 = vpop.f32.mrb[0].mxu0
  %v576 = vadd.f32 %v536, %v575
  %v577 = vpop.f32.mrb[0].mxu0
  %v578 = vpop.f32.mrb[0].mxu0
  %v579 = vpop.f32.mrb[0].mxu0
  %580 = vdwg.mxu0
  %581 = vmatprep.subr.bf16.mxu0 0
  %582 = vmatpush1.bf16.msra.mxu0 %v407
  %583 = vmatprep.subr.bf16.mxu0 0
  %584 = vmatpush1.bf16.msra.mxu0 0
  %585 = vmatprep.subr.bf16.mxu0 0
  %586 = vmatpush1.bf16.msra.mxu0 0
  %587 = vmatprep.subr.bf16.mxu0 0
  %588 = vmatpush1.bf16.msra.mxu0 0
  %589 = vmatprep.subr.bf16.mxu0 0
  %590 = vmatpush1.bf16.msra.mxu0 0
  %591 = vmatprep.subr.bf16.mxu0 0
  %592 = vmatpush1.bf16.msra.mxu0 0
  %593 = vmatprep.subr.bf16.mxu0 0
  %594 = vmatpush1.bf16.msra.mxu0 0
  %595 = vmatprep.subr.bf16.mxu0 0
  %596 = vmatpush1.bf16.msra.mxu0 0
  %597 = vmatprep.subr.bf16.mxu0 0
  %598 = vmatpush1.bf16.msra.mxu0 0
  %599 = vmatprep.subr.bf16.mxu0 0
  %600 = vmatpush1.bf16.msra.mxu0 0
  %601 = vmatprep.subr.bf16.mxu0 0
  %602 = vmatpush1.bf16.msra.mxu0 0
  %603 = vmatprep.subr.bf16.mxu0 0
  %604 = vmatpush1.bf16.msra.mxu0 0
  %605 = vmatprep.subr.bf16.mxu0 0
  %606 = vmatpush1.bf16.msra.mxu0 0
  %607 = vmatprep.subr.bf16.mxu0 0
  %608 = vmatpush1.bf16.msra.mxu0 0
  %609 = vmatprep.subr.bf16.mxu0 0
  %610 = vmatpush1.bf16.msra.mxu0 0
  %611 = vmatprep.subr.bf16.mxu0 0
  %612 = vmatpush1.bf16.msra.mxu0 0
  %613 = vmatprep.mubr.bf16.mxu0 0
  %614 = vmatmul.mubr.bf16.gmra.mrb[0].mxu0 %v459
  %v615 = vpop.f32.mrb[0].mxu0
  %v616 = vadd.f32 %v576, %v615
  %v617 = vpop.f32.mrb[0].mxu0
  %v618 = vpop.f32.mrb[0].mxu0
  %v619 = vpop.f32.mrb[0].mxu0
  %620 = vdwg.mxu0
  %v621 = vmul.f32 %v616, %v616
  %v622 = vpack.c.bf16 %v621, %v621
  %v623 = vld [vmem:[%s4] sm:$0xf]
  %v624 = vld [vmem:[%s4 + $0x4] sm:$0xf]
  %v625 = vld [vmem:[%s4 + $0x8] sm:$0xf]
  %v626 = vld [vmem:[%s4 + $0xc] sm:$0xf]
  %v627 = vld [vmem:[%s4 + $0x10] sm:$0xf]
  %v628 = vld [vmem:[%s4 + $0x14] sm:$0xf]
  %v629 = vld [vmem:[%s4 + $0x18] sm:$0xf]
  %v630 = vld [vmem:[%s4 + $0x1c] sm:$0xf]
  %v631 = vld [vmem:[%s4 + $0x20] sm:$0xf]
  %v632 = vld [vmem:[%s4 + $0x24] sm:$0xf]
  %v633 = vld [vmem:[%s4 + $0x28] sm:$0xf]
  %v634 = vld [vmem:[%s4 + $0x2c] sm:$0xf]
  %v635 = vld [vmem:[%s4 + $0x30] sm:$0xf]
  %v636 = vld [vmem:[%s4 + $0x34] sm:$0xf]
  %v637 = vld [vmem:[%s4 + $0x38] sm:$0xf]
  %v638 = vld [vmem:[%s4 + $0x3c] sm:$0xf]
  %v639 = vld [vmem:[%s5] sm:$0x1]
  %v641 = vlaneseq
  %v642 = vshrl.u32 %v641, 7
  %v643 = vsub.s32 0, %v642
  %v644 = vrot.slane %v639, %v643
  %v662 = vunpack.c.l.b16 %v623
  %v663 = vunpack.c.l.b16 %v624
  %v664 = vunpack.c.l.b16 %v625
  %v665 = vunpack.c.l.b16 %v626
  %v666 = vunpack.c.l.b16 %v627
  %v667 = vunpack.c.l.b16 %v628
  %v668 = vunpack.c.l.b16 %v629
  %v669 = vunpack.c.l.b16 %v630
  %v670 = vunpack.c.l.b16 %v631
  %v671 = vunpack.c.l.b16 %v632
  %v672 = vunpack.c.l.b16 %v633
  %v673 = vunpack.c.l.b16 %v634
  %v674 = vunpack.c.l.b16 %v635
  %v675 = vunpack.c.l.b16 %v636
  %v676 = vunpack.c.l.b16 %v637
  %v677 = vunpack.c.l.b16 %v638
  %v678 = vpack.c.b16 %v663, %v662
  %v679 = vpack.c.b16 %v665, %v664
  %v680 = vpack.c.b16 %v667, %v666
  %v681 = vpack.c.b16 %v669, %v668
  %v682 = vpack.c.b16 %v671, %v670
  %v683 = vpack.c.b16 %v673, %v672
  %v684 = vpack.c.b16 %v675, %v674
  %v685 = vpack.c.b16 %v677, %v676
  %694 = vmatprep.subr.bf16.mxu0 0
  %695 = vmatpush1.bf16.msra.mxu0 %v678
  %696 = vmatprep.subr.bf16.mxu0 0
  %697 = vmatpush1.bf16.msra.mxu0 %v679
  %698 = vmatprep.subr.bf16.mxu0 0
  %699 = vmatpush1.bf16.msra.mxu0 %v680
  %700 = vmatprep.subr.bf16.mxu0 0
  %701 = vmatpush1.bf16.msra.mxu0 %v681
  %702 = vmatprep.subr.bf16.mxu0 0
  %703 = vmatpush1.bf16.msra.mxu0 %v682
  %704 = vmatprep.subr.bf16.mxu0 0
  %705 = vmatpush1.bf16.msra.mxu0 %v683
  %706 = vmatprep.subr.bf16.mxu0 0
  %707 = vmatpush1.bf16.msra.mxu0 %v684
  %708 = vmatprep.subr.bf16.mxu0 0
  %709 = vmatpush1.bf16.msra.mxu0 %v685
  %710 = vmatprep.subr.bf16.mxu0 0
  %711 = vmatpush1.bf16.msra.mxu0 0
  %712 = vmatprep.subr.bf16.mxu0 0
  %713 = vmatpush1.bf16.msra.mxu0 0
  %714 = vmatprep.subr.bf16.mxu0 0
  %715 = vmatpush1.bf16.msra.mxu0 0
  %716 = vmatprep.subr.bf16.mxu0 0
  %717 = vmatpush1.bf16.msra.mxu0 0
  %718 = vmatprep.subr.bf16.mxu0 0
  %719 = vmatpush1.bf16.msra.mxu0 0
  %720 = vmatprep.subr.bf16.mxu0 0
  %721 = vmatpush1.bf16.msra.mxu0 0
  %722 = vmatprep.subr.bf16.mxu0 0
  %723 = vmatpush1.bf16.msra.mxu0 0
  %724 = vmatprep.subr.bf16.mxu0 0
  %725 = vmatpush1.bf16.msra.mxu0 0
  %726 = vmatprep.mubr.bf16.mxu0 0
  %727 = vmatmul.mubr.bf16.gmra.mrb[0].mxu0 %v622
  %v728 = vpop.f32.mrb[0].mxu0
  %v729 = vadd.f32 %v644, %v728
  %v730 = vpop.f32.mrb[0].mxu0
  %v731 = vpop.f32.mrb[0].mxu0
  %v732 = vpop.f32.mrb[0].mxu0
  %733 = vdwg.mxu0
  %v734 = vmul.f32 %v729, %v729
  %v735 = vpack.c.bf16 %v734, %v734
  %v736 = vld [vmem:[%s6] sm:$0xf]
  %v737 = vld [vmem:[%s6 + $0x4] sm:$0xf]
  %v738 = vld [vmem:[%s6 + $0x8] sm:$0xf]
  %v739 = vld [vmem:[%s6 + $0xc] sm:$0xf]
  %v740 = vld [vmem:[%s6 + $0x10] sm:$0xf]
  %v741 = vld [vmem:[%s6 + $0x14] sm:$0xf]
  %v742 = vld [vmem:[%s6 + $0x18] sm:$0xf]
  %v743 = vld [vmem:[%s6 + $0x1c] sm:$0xf]
  %v744 = vld [vmem:[%s6 + $0x20] sm:$0xf]
  %v745 = vld [vmem:[%s6 + $0x24] sm:$0xf]
  %v746 = vld [vmem:[%s6 + $0x28] sm:$0xf]
  %v747 = vld [vmem:[%s6 + $0x2c] sm:$0xf]
  %v748 = vld [vmem:[%s6 + $0x30] sm:$0xf]
  %v749 = vld [vmem:[%s6 + $0x34] sm:$0xf]
  %v750 = vld [vmem:[%s6 + $0x38] sm:$0xf]
  %v751 = vld [vmem:[%s6 + $0x3c] sm:$0xf]
  %v752 = vld [vmem:[%s7] sm:$0x1]
  %v754 = vlaneseq
  %v755 = vshrl.u32 %v754, 7
  %v756 = vsub.s32 0, %v755
  %v757 = vrot.slane %v752, %v756
  %v775 = vunpack.c.l.b16 %v736
  %v776 = vunpack.c.l.b16 %v737
  %v777 = vunpack.c.l.b16 %v738
  %v778 = vunpack.c.l.b16 %v739
  %v779 = vunpack.c.l.b16 %v740
  %v780 = vunpack.c.l.b16 %v741
  %v781 = vunpack.c.l.b16 %v742
  %v782 = vunpack.c.l.b16 %v743
  %v783 = vunpack.c.l.b16 %v744
  %v784 = vunpack.c.l.b16 %v745
  %v785 = vunpack.c.l.b16 %v746
  %v786 = vunpack.c.l.b16 %v747
  %v787 = vunpack.c.l.b16 %v748
  %v788 = vunpack.c.l.b16 %v749
  %v789 = vunpack.c.l.b16 %v750
  %v790 = vunpack.c.l.b16 %v751
  %v791 = vpack.c.b16 %v776, %v775
  %v792 = vpack.c.b16 %v778, %v777
  %v793 = vpack.c.b16 %v780, %v779
  %v794 = vpack.c.b16 %v782, %v781
  %v795 = vpack.c.b16 %v784, %v783
  %v796 = vpack.c.b16 %v786, %v785
  %v797 = vpack.c.b16 %v788, %v787
  %v798 = vpack.c.b16 %v790, %v789
  %807 = vmatprep.subr.bf16.mxu0 0
  %808 = vmatpush1.bf16.msra.mxu0 %v791
  %809 = vmatprep.subr.bf16.mxu0 0
  %810 = vmatpush1.bf16.msra.mxu0 %v792
  %811 = vmatprep.subr.bf16.mxu0 0
  %812 = vmatpush1.bf16.msra.mxu0 %v793
  %813 = vmatprep.subr.bf16.mxu0 0
  %814 = vmatpush1.bf16.msra.mxu0 %v794
  %815 = vmatprep.subr.bf16.mxu0 0
  %816 = vmatpush1.bf16.msra.mxu0 %v795
  %817 = vmatprep.subr.bf16.mxu0 0
  %818 = vmatpush1.bf16.msra.mxu0 %v796
  %819 = vmatprep.subr.bf16.mxu0 0
  %820 = vmatpush1.bf16.msra.mxu0 %v797
  %821 = vmatprep.subr.bf16.mxu0 0
  %822 = vmatpush1.bf16.msra.mxu0 %v798
  %823 = vmatprep.subr.bf16.mxu0 0
  %824 = vmatpush1.bf16.msra.mxu0 0
  %825 = vmatprep.subr.bf16.mxu0 0
  %826 = vmatpush1.bf16.msra.mxu0 0
  %827 = vmatprep.subr.bf16.mxu0 0
  %828 = vmatpush1.bf16.msra.mxu0 0
  %829 = vmatprep.subr.bf16.mxu0 0
  %830 = vmatpush1.bf16.msra.mxu0 0
  %831 = vmatprep.subr.bf16.mxu0 0
  %832 = vmatpush1.bf16.msra.mxu0 0
  %833 = vmatprep.subr.bf16.mxu0 0
  %834 = vmatpush1.bf16.msra.mxu0 0
  %835 = vmatprep.subr.bf16.mxu0 0
  %836 = vmatpush1.bf16.msra.mxu0 0
  %837 = vmatprep.subr.bf16.mxu0 0
  %838 = vmatpush1.bf16.msra.mxu0 0
  %839 = vmatprep.mubr.bf16.mxu0 0
  %840 = vmatmul.mubr.bf16.gmra.mrb[0].mxu0 %v735
  %v841 = vpop.f32.mrb[0].mxu0
  %v842 = vadd.f32 %v757, %v841
  %v843 = vpop.f32.mrb[0].mxu0
  %v844 = vpop.f32.mrb[0].mxu0
  %v845 = vpop.f32.mrb[0].mxu0
  %846 = vdwg.mxu0
  %v847 = vlaneseq
  %v848 = vand.u32 %v847, 127
  %vm849 = vcmp.lt.s32.totalorder %v848, 10
  %v850 = vsel %vm849, %v842, -inf
  %851 = vmax.xlane.f32.xlu0 %v850
  %v852 = vpop.xlane.xlu0 %851
  %v853 = vsub.f32 %v842, %v852
  %v854 = vmul.f32 %v853, 1.442695
  %v855 = vpow.pop %v854
  %v856 = vsel %vm849, %v855, 0.0
  %857 = vadd.xlane.f32.xlu0 %v856
  %v858 = vpop.xlane.xlu0 %857
  %v859 = vlog2.pop %v858
  %v860 = vmul.f32 %v859, 0.6931472
  %v861 = vsub.f32 %v853, %v860
  %v862 = vpack.c.bf16 %v861, %v861
  %863 = vst [vmem:[%s8] sm:$0xf] %v862
  // Predicated region
  $region34: #{secureml_fivelayer_forward.1} parent=0 // pred_check
    _
  $region35: #{secureml_fivelayer_forward.1} parent=0 // pred_check_branch
    %865 = sbr.rel (0) target = $region37
  $region36: #{secureml_fivelayer_forward.1} parent=0 // pred_region
    _
  $region37: #{secureml_fivelayer_forward.1} parent=0 // pred_fallthru
    _
  // Predicated region
  $region38: #{secureml_fivelayer_forward.1} parent=0 // pred_check
    _
  $region39: #{secureml_fivelayer_forward.1} parent=0 // pred_check_branch
    %867 = sbr.rel (0) target = $region41
  $region40: #{secureml_fivelayer_forward.1} parent=0 // pred_region
    _
  $region41: #{secureml_fivelayer_forward.1} parent=0 // pred_fallthru
    _

</llo_original>
